<compile_context>
chip_gen: v7x
topology: tpu7x:2x2x1
jax: 0.10.0
libtpu: 0.0.40
codegen_flags: <defaults>
</compile_context>

<pallas_src>
import jax
import jax.numpy as jnp
from jax.experimental import pallas as pl
from jax.experimental.pallas import tpu as pltpu


# ----------------------------- helpers ------------------------------------- #

def _round_up(x, m):
    return ((x + m - 1) // m) * m


def _pick_spatial_tile(hw, tb, c, bytes_per_elem=4, budget_bytes=2 * 1024 * 1024):
    """Largest multiple-of-128 divisor of `hw` whose (tb, c, thw) tile fits budget."""
    target = max(128, budget_bytes // (bytes_per_elem * max(1, tb * c)))
    if hw <= target or hw % 128 != 0:
        return hw
    t = (min(target, hw) // 128) * 128
    while t >= 128:
        if hw % t == 0:
            return t
        t -= 128
    return hw


# ----------------------------- kernel -------------------------------------- #

def _fused_kernel(x_ref, wf_ref, wc_ref, o_ref, pooled_acc):
    # x_ref:      (TB, C, THW)  input image tile, spatial chunk k
    # wf_ref:     (C, Fp)       pooled->feature projection (mean scale pre-folded)
    # wc_ref:     (Fp, Np)      all task heads concatenated, lane-padded
    # o_ref:      (TB, Np)      padded fused logits
    # pooled_acc: (TB, C) f32   VMEM scratch: running spatial sum
    k = pl.program_id(1)

    @pl.when(k == 0)
    def _():
        pooled_acc[...] = jnp.zeros_like(pooled_acc)

    # accumulate spatial sum (mean's 1/(H*W) is folded into wf)
    pooled_acc[...] += jnp.sum(x_ref[...], axis=-1)

    @pl.when(k == pl.num_programs(1) - 1)
    def _():
        feat = jnp.dot(pooled_acc[...], wf_ref[...],
                       preferred_element_type=jnp.float32)       # MXU
        feat = jnp.maximum(feat, 0.0)                            # ReLU (VPU)
        o_ref[...] = jnp.dot(feat, wc_ref[...],
                             preferred_element_type=jnp.float32
                             ).astype(o_ref.dtype)               # MXU, lane-dense store


# ----------------------------- wrapper -------------------------------------- #

def network_forward(x_nchw, params, compute_input_matrix=False):
    """Mirrors Network.forward: returns a list of per-task logits."""
    # TODO(synk): compute_input_matrix only drives GPM's internal activation
    # bookkeeping in the original backbone; it does not change returned logits.
    del compute_input_matrix

    w_feat = params["w_feat"]          # (C, feat_dim)
    w_cls_t = params["w_cls_t"]        # (feat_dim, total_cls)
    cls_sizes = params["cls_sizes"]

    B, C, H, W = x_nchw.shape
    HW = H * W
    feat_dim = w_feat.shape[1]
    total_cls = w_cls_t.shape[1]

    # lane-dense padding of both matmul N-dimensions
    Fp = _round_up(feat_dim, 128)
    Np = _round_up(total_cls, 128)

    # fold 1/(H*W) into w_feat; zero-pad padded rows/cols (padded features are
    # zero after ReLU, padded logits columns are sliced off below)
    wf = jnp.zeros((C, Fp), jnp.float32).at[:, :feat_dim].set(
        w_feat.astype(jnp.float32) / float(HW))
    wc = jnp.zeros((Fp, Np), jnp.float32).at[:feat_dim, :total_cls].set(
        w_cls_t.astype(jnp.float32))

    # batch tile: sublane-friendly, capped small enough for v7x's 64 MiB VMEM
    TB = min(_round_up(B, 8), 256)
    Bp = _round_up(B, TB)

    # spatial reduction tile: keeps the double-buffered x tile within budget
    THW = _pick_spatial_tile(HW, TB, C)

    x_flat = x_nchw.reshape(B, C, HW).astype(jnp.float32)
    if Bp != B:
        x_flat = jnp.pad(x_flat, ((0, Bp - B), (0, 0), (0, 0)))

    grid = (Bp // TB, HW // THW)

    logits_padded = pl.pallas_call(
        _fused_kernel,
        out_shape=jax.ShapeDtypeStruct((Bp, Np), jnp.float32),
        grid_spec=pltpu.PrefetchScalarGridSpec(
            num_scalar_prefetch=0,
            grid=grid,
            in_specs=[
                pl.BlockSpec((TB, C, THW), lambda i, k: (i, 0, k)),  # streamed x
                pl.BlockSpec((C, Fp), lambda i, k: (0, 0)),          # resident weights
                pl.BlockSpec((Fp, Np), lambda i, k: (0, 0)),
            ],
            out_specs=pl.BlockSpec((TB, Np), lambda i, k: (i, 0)),
            scratch_shapes=[pltpu.VMEM((TB, C), jnp.float32)],
        ),
        compiler_params=pltpu.CompilerParams(
            dimension_semantics=("parallel", "arbitrary")),
    )(x_flat, wf, wc)

    logits_all = logits_padded[:B, :total_cls]
    logits, off = [], 0
    for n in cls_sizes:
        logits.append(logits_all[:, off:off + n])
        off += n
    return logits


# ----------------------------- setup / reference ---------------------------- #

def init_params(key, in_channels, feat_dim, init_cls_num, inc_cls_num, task_num):
    k_feat, *k_cls = jax.random.split(key, 1 + task_num)
    w_feat = jax.random.normal(k_feat, (in_channels, feat_dim),
                               dtype=jnp.float32) * 0.1
    cls_sizes = [init_cls_num] + [inc_cls_num] * (task_num - 1)
    # nn.Linear(feat_dim, n, bias=False) weight is (n, feat_dim); forward is x @ W.T
    w_heads = [jax.random.normal(k, (n, feat_dim), dtype=jnp.float32) * 0.1
               for k, n in zip(k_cls, cls_sizes)]
    w_all = jnp.concatenate(w_heads, axis=0)          # (total_cls, feat_dim)
    return {
        "w_feat": w_feat,
        "w_cls_t": w_all.T,                           # (feat_dim, total_cls)
        "cls_sizes": cls_sizes,
    }


def reference_forward(x_nchw, params):
    pooled = jnp.mean(x_nchw.reshape(x_nchw.shape[0], x_nchw.shape[1], -1), -1)
    feats = jnp.maximum(pooled @ params["w_feat"], 0.0)
    all_logits = feats @ params["w_cls_t"]
    out, off = [], 0
    for n in params["cls_sizes"]:
        out.append(all_logits[:, off:off + n])
        off += n
    return out


if __name__ == "__main__":
    B, C, H, W = 2, 4, 16, 16
    feat_dim = 32
    init_cls_num, inc_cls_num, task_num = 4, 2, 3

    key = jax.random.PRNGKey(0)
    k_x, k_p = jax.random.split(key)
    x = jax.random.normal(k_x, (B, C, H, W), dtype=jnp.float32)
    params = init_params(k_p, C, feat_dim, init_cls_num, inc_cls_num, task_num)

    logits = network_forward(x, params, compute_input_matrix=False)
    logits = [jax.block_until_ready(l) for l in logits]

    ref = reference_forward(x, params)
    for got, want in zip(logits, ref):
        assert got.shape == want.shape, (got.shape, want.shape)
        assert jnp.allclose(got, want, atol=1e-5, rtol=1e-5)

    print("KERNEL_OK")
</pallas_src>

<mosaic_0001>
module attributes {stable_mosaic.version = 11 : i64} {
  func.func @_fused_kernel(%arg0: i32, %arg1: i32, %arg2: memref<8x4x256xf32, #tpu.memory_space<vmem>>, %arg3: memref<4x128xf32, #tpu.memory_space<vmem>>, %arg4: memref<128x128xf32, #tpu.memory_space<vmem>>, %arg5: memref<8x128xf32, #tpu.memory_space<vmem>>, %arg6: memref<8x4xf32, #tpu.memory_space<vmem>>) attributes {dimension_semantics = [#tpu.dimension_semantics<parallel>, #tpu.dimension_semantics<arbitrary>], iteration_bounds = array<i64: 1, 1>, scalar_prefetch = 0 : i64, scratch_operands = 1 : i64, tpu.core_type = #tpu.core_type<tc>, window_params = [{transform_indices = @transform_0, window_bounds = array<i64: 8, 4, 256>}, {pipeline_mode = #tpu.pipeline_mode<synchronous>, transform_indices = @transform_1, window_bounds = array<i64: 4, 128>}, {pipeline_mode = #tpu.pipeline_mode<synchronous>, transform_indices = @transform_2, window_bounds = array<i64: 128, 128>}, {transform_indices = @transform_3, window_bounds = array<i64: 8, 128>}]} {
    %c0_i32 = arith.constant 0 : i32
    %0 = arith.cmpi eq, %arg1, %c0_i32 : i32
    %1 = arith.extui %0 : i1 to i32
    %c0_i32_0 = arith.constant 0 : i32
    %2 = arith.cmpi ne, %1, %c0_i32_0 : i32
    scf.if %2 {
      %cst_9 = arith.constant 0.000000e+00 : f32
      %11 = vector.broadcast %cst_9 : f32 to vector<8x4xf32>
      %c0_10 = arith.constant 0 : index
      %c0_11 = arith.constant 0 : index
      %12 = vector.load %arg6[%c0_10, %c0_11] : memref<8x4xf32, #tpu.memory_space<vmem>>, vector<8x4xf32>
      tpu.vector_store %arg6[%c0_10, %c0_11], %11 {strides = array<i32>} : memref<8x4xf32, #tpu.memory_space<vmem>>, vector<8x4xf32>,
    } else {
    }
    %c0 = arith.constant 0 : index
    %c0_1 = arith.constant 0 : index
    %3 = vector.load %arg6[%c0, %c0_1] : memref<8x4xf32, #tpu.memory_space<vmem>>, vector<8x4xf32>
    %c0_2 = arith.constant 0 : index
    %c0_3 = arith.constant 0 : index
    %c0_4 = arith.constant 0 : index
    %4 = vector.load %arg2[%c0_2, %c0_3, %c0_4] : memref<8x4x256xf32, #tpu.memory_space<vmem>>, vector<8x4x256xf32>
    %cst = arith.constant dense<0.000000e+00> : vector<8x4xf32>
    %5 = vector.multi_reduction <add>, %4, %cst [2] : vector<8x4x256xf32> to vector<8x4xf32>
    %6 = arith.addf %3, %5 : vector<8x4xf32>
    %c0_5 = arith.constant 0 : index
    %c0_6 = arith.constant 0 : index
    %7 = vector.load %arg6[%c0_5, %c0_6] : memref<8x4xf32, #tpu.memory_space<vmem>>, vector<8x4xf32>
    tpu.vector_store %arg6[%c0_5, %c0_6], %6 {strides = array<i32>} : memref<8x4xf32, #tpu.memory_space<vmem>>, vector<8x4xf32>,
    %c0_i32_7 = arith.constant 0 : i32
    %8 = arith.cmpi eq, %arg1, %c0_i32_7 : i32
    %9 = arith.extui %8 : i1 to i32
    %c0_i32_8 = arith.constant 0 : i32
    %10 = arith.cmpi ne, %9, %c0_i32_8 : i32
    scf.if %10 {
      %c0_9 = arith.constant 0 : index
      %c0_10 = arith.constant 0 : index
      %11 = vector.load %arg6[%c0_9, %c0_10] : memref<8x4xf32, #tpu.memory_space<vmem>>, vector<8x4xf32>
      %c0_11 = arith.constant 0 : index
      %c0_12 = arith.constant 0 : index
      %12 = vector.load %arg3[%c0_11, %c0_12] : memref<4x128xf32, #tpu.memory_space<vmem>>, vector<4x128xf32>
      %cst_13 = arith.constant dense<0.000000e+00> : vector<8x128xf32>
      %13 = tpu.matmul %11, %12, %cst_13 {dimension_numbers = #tpu.dot_dimension_numbers<[1], [0], [0], [1], [0, 0, 1, 1], [], []>} : vector<8x4xf32>, vector<4x128xf32>, vector<8x128xf32> -> vector<8x128xf32>
      %cst_14 = arith.constant 0.000000e+00 : f32
      %14 = vector.broadcast %cst_14 : f32 to vector<8x128xf32>
      %15 = arith.maximumf %13, %14 : vector<8x128xf32>
      %c0_15 = arith.constant 0 : index
      %c0_16 = arith.constant 0 : index
      %16 = vector.load %arg4[%c0_15, %c0_16] : memref<128x128xf32, #tpu.memory_space<vmem>>, vector<128x128xf32>
      %cst_17 = arith.constant dense<0.000000e+00> : vector<8x128xf32>
      %17 = tpu.matmul %15, %16, %cst_17 {dimension_numbers = #tpu.dot_dimension_numbers<[1], [0], [0], [1], [0, 0, 1, 1], [], []>} : vector<8x128xf32>, vector<128x128xf32>, vector<8x128xf32> -> vector<8x128xf32>
      %c0_18 = arith.constant 0 : index
      %c0_19 = arith.constant 0 : index
      %18 = vector.load %arg5[%c0_18, %c0_19] : memref<8x128xf32, #tpu.memory_space<vmem>>, vector<8x128xf32>
      tpu.vector_store %arg5[%c0_18, %c0_19], %17 {strides = array<i32>} : memref<8x128xf32, #tpu.memory_space<vmem>>, vector<8x128xf32>,
    } else {
    }
    return
  }
  func.func @transform_0(%arg0: i32, %arg1: i32) -> (i32, i32, i32) {
    %c0_i32 = arith.constant 0 : i32
    %c0_i32_0 = arith.constant 0 : i32
    return %arg0, %c0_i32, %arg1 : i32, i32, i32
  }
  func.func @transform_1(%arg0: i32, %arg1: i32) -> (i32, i32) {
    %c0_i32 = arith.constant 0 : i32
    %c0_i32_0 = arith.constant 0 : i32
    %c0_i32_1 = arith.constant 0 : i32
    return %c0_i32, %c0_i32_0 : i32, i32
  }
  func.func @transform_2(%arg0: i32, %arg1: i32) -> (i32, i32) {
    %c0_i32 = arith.constant 0 : i32
    %c0_i32_0 = arith.constant 0 : i32
    %c0_i32_1 = arith.constant 0 : i32
    return %c0_i32, %c0_i32_0 : i32, i32
  }
  func.func @transform_3(%arg0: i32, %arg1: i32) -> (i32, i32) {
    %c0_i32 = arith.constant 0 : i32
    %c0_i32_0 = arith.constant 0 : i32
    return %arg0, %c0_i32 : i32, i32
  }
}

</mosaic_0001>

<llo_original>
// kernel: tpu_custom_call.1
$region0: #{tpu_custom_call.1}
  #allocation0 [shape = 'u32[]', space=smem, size = 0x4, offset = 0x4, fixed_abs, tag = 'smem constant byte address 0x4 - core index']
  #allocation1 [shape = 'u32[144,128]{1,0:T(1,128)}', space=vmem, size = 0x12000, scoped, tag = 'internal scratch']
  #allocation2 [shape = 'f32[8,4]{1,0:T(8,128)}', space=vmem, size = 0x1000, scoped, tag = 'scratch operand']
  %s0 = inlined_call_operand.hbm [shape: f32[8,4,256], index: 0, kind: input, shape index: {}]
  %s1 = inlined_call_operand.hbm [shape: f32[4,128], index: 1, kind: input, shape index: {}]
  %s2 = inlined_call_operand.hbm [shape: f32[128,128], index: 2, kind: input, shape index: {}]
  %s3 = inlined_call_operand.hbm [shape: f32[8,128], index: 3, kind: output, shape index: {}]
  %s4 = sld [smem:[#allocation0]]
  $region42: #{tpu_custom_call.1} parent=0
    _
  %s6 = ssub.s32 1, %s4
  %s7 = scalar_select 0, %s6, %s4
  $region1: #{tpu_custom_call.1} parent=0
    #allocation3 [shape = 'u8[32768]{0}', space=vmem, size = 0x8000, scoped, tag = 'input window, operand 0, single buffered']
    #allocation4 [shape = 's32[1]{0}', space=sflag, size = 0x4, scoped, tag = 'scoped memory for tpu_custom_call.1']
    #allocation5 [shape = 's32[1]{0}', space=sflag, size = 0x4, scoped, tag = 'scoped memory for tpu_custom_call.1']
    #allocation6 [shape = 'u8[2048]{0}', space=vmem, size = 0x800, scoped, tag = 'input window, operand 1, single buffered']
    #allocation7 [shape = 's32[1]{0}', space=sflag, size = 0x4, scoped, tag = 'scoped memory for tpu_custom_call.1']
    #allocation8 [shape = 'u8[65536]{0}', space=vmem, size = 0x10000, scoped, tag = 'input window, operand 2, single buffered']
    #allocation9 [shape = 'u8[4096]{0}', space=vmem, size = 0x1000, scoped, tag = 'output window, operand 0, single buffered']
    %8 = vsyncpa [#allocation4], 0
    %9 = vsyncpa [#allocation7], 0
    %10 = vsyncpa [#allocation5], 0
    // Predicated region
    $region2: #{tpu_custom_call.1} parent=1 // pred_check
      _
    $region3: #{tpu_custom_call.1} parent=1 // pred_check_branch
      %12 = sbr.rel (0) target = $region5
    $region4: #{tpu_custom_call.1} parent=1 // pred_region
      %s14 = ssub.s32 1024, 1024
      %15 = vsyncadd [#allocation4], %s14
      %s16 = sshll.u32 [#allocation3], 4
      %s17 = int_to_ptr.vmem [resolvable:$true] %s16
      %22 = dma.hbm_to_vmem [thread:$0]  %s0, 1024, %s17, [#allocation4], 128, 128, 8
    $region5: #{tpu_custom_call.1} parent=1 // pred_fallthru
      _
    // Predicated region
    $region6: #{tpu_custom_call.1} parent=1 // pred_check
      _
    $region7: #{tpu_custom_call.1} parent=1 // pred_check_branch
      %24 = sbr.rel (0) target = $region9
    $region8: #{tpu_custom_call.1} parent=1 // pred_region
      %s26 = ssub.s32 64, 64
      %27 = vsyncadd [#allocation7], %s26
      %s29 = sshll.u32 [#allocation6], 4
      %s30 = int_to_ptr.vmem [resolvable:$true] %s29
      %32 = dma.hbm_to_vmem [thread:$0]  %s1, 64, %s30, [#allocation7]
    $region9: #{tpu_custom_call.1} parent=1 // pred_fallthru
      _
    // Predicated region
    $region10: #{tpu_custom_call.1} parent=1 // pred_check
      _
    $region11: #{tpu_custom_call.1} parent=1 // pred_check_branch
      %34 = sbr.rel (0) target = $region13
    $region12: #{tpu_custom_call.1} parent=1 // pred_region
      %s36 = ssub.s32 2048, 2048
      %37 = vsyncadd [#allocation7], %s36
      %s38 = sshll.u32 [#allocation8], 4
      %s39 = int_to_ptr.vmem [resolvable:$true] %s38
      %44 = dma.hbm_to_vmem [thread:$0]  %s2, 2048, %s39, [#allocation7], 128, 128, 8
    $region13: #{tpu_custom_call.1} parent=1 // pred_fallthru
      _
    // Predicated region
    $region14: #{tpu_custom_call.1} parent=1 // pred_check
      _
    $region15: #{tpu_custom_call.1} parent=1 // pred_check_branch
      %46 = sbr.rel (0) target = $region17
    $region16: #{tpu_custom_call.1} parent=1 // pred_region
      %47 = dma.done [#allocation4], 1024
    $region17: #{tpu_custom_call.1} parent=1 // pred_fallthru
      _
    // Predicated region
    $region18: #{tpu_custom_call.1} parent=1 // pred_check
      _
    $region19: #{tpu_custom_call.1} parent=1 // pred_check_branch
      %49 = sbr.rel (0) target = $region21
    $region20: #{tpu_custom_call.1} parent=1 // pred_region
      %50 = dma.done [#allocation7], 64
    $region21: #{tpu_custom_call.1} parent=1 // pred_fallthru
      _
    // Predicated region
    $region22: #{tpu_custom_call.1} parent=1 // pred_check
      _
    $region23: #{tpu_custom_call.1} parent=1 // pred_check_branch
      %52 = sbr.rel (0) target = $region25
    $region24: #{tpu_custom_call.1} parent=1 // pred_region
      %53 = dma.done [#allocation7], 2048
    $region25: #{tpu_custom_call.1} parent=1 // pred_fallthru
      _
    %p54 = scmp.eq.s32.totalorder 0, 0
    // Predicated region
    $region26: #{tpu_custom_call.1} parent=1 // pred_check
      %p55 = pneg %p54
    $region27: #{tpu_custom_call.1} parent=1 // pred_check_branch
      %57 = sbr.rel (%p55) target = $region29
    $region28: #{tpu_custom_call.1} parent=1 // pred_region
      %vm58 = vcmask 31744
      %59 = vst.msk [vmem:[#allocation2] sm:$0xff] %vm58, 0.0
    $region29: #{tpu_custom_call.1} parent=1 // pred_fallthru
      _
    %v60 = vld [vmem:[#allocation2] sm:$0xff]
    %v61 = vld [vmem:[#allocation3] sm:$0xff]
    %v62 = vld [vmem:[#allocation3 + $0x8] sm:$0xff]
    %v63 = vld [vmem:[#allocation3 + $0x10] sm:$0xff]
    %v64 = vld [vmem:[#allocation3 + $0x18] sm:$0xff]
    %v65 = vld [vmem:[#allocation3 + $0x20] sm:$0xff]
    %v66 = vld [vmem:[#allocation3 + $0x28] sm:$0xff]
    %v67 = vld [vmem:[#allocation3 + $0x30] sm:$0xff]
    %v68 = vld [vmem:[#allocation3 + $0x38] sm:$0xff]
    %v77 = vcombine.high %v61, %v61
    %v78 = vcombine.high %v62, %v62
    %v79 = vcombine.high %v63, %v63
    %v80 = vcombine.high %v64, %v64
    %v81 = vcombine.high %v65, %v65
    %v82 = vcombine.high %v66, %v66
    %v83 = vcombine.high %v67, %v67
    %v84 = vcombine.high %v68, %v68
    %vm93 = vcmask 1043456
    %v94 = vsel %vm93, %v61, 0.0
    %v95 = vsel %vm93, %v77, 0.0
    %v96 = vadd.f32 %v94, %v95
    %97 = vadd.xlane.f32.xlu0 %v96
    %v98 = vpop.xlane.xlu0 %97
    %v99 = vsel %vm93, %v62, 0.0
    %v100 = vsel %vm93, %v78, 0.0
    %v101 = vadd.f32 %v99, %v100
    %102 = vadd.xlane.f32.xlu0 %v101
    %v103 = vpop.xlane.xlu0 %102
    %v104 = vsel %vm93, %v63, 0.0
    %v105 = vsel %vm93, %v79, 0.0
    %v106 = vadd.f32 %v104, %v105
    %107 = vadd.xlane.f32.xlu0 %v106
    %v108 = vpop.xlane.xlu0 %107
    %v109 = vsel %vm93, %v64, 0.0
    %v110 = vsel %vm93, %v80, 0.0
    %v111 = vadd.f32 %v109, %v110
    %112 = vadd.xlane.f32.xlu0 %v111
    %v113 = vpop.xlane.xlu0 %112
    %v114 = vsel %vm93, %v65, 0.0
    %v115 = vsel %vm93, %v81, 0.0
    %v116 = vadd.f32 %v114, %v115
    %117 = vadd.xlane.f32.xlu0 %v116
    %v118 = vpop.xlane.xlu0 %117
    %v119 = vsel %vm93, %v66, 0.0
    %v120 = vsel %vm93, %v82, 0.0
    %v121 = vadd.f32 %v119, %v120
    %122 = vadd.xlane.f32.xlu0 %v121
    %v123 = vpop.xlane.xlu0 %122
    %v124 = vsel %vm93, %v67, 0.0
    %v125 = vsel %vm93, %v83, 0.0
    %v126 = vadd.f32 %v124, %v125
    %127 = vadd.xlane.f32.xlu0 %v126
    %v128 = vpop.xlane.xlu0 %127
    %v129 = vsel %vm93, %v68, 0.0
    %v130 = vsel %vm93, %v84, 0.0
    %v131 = vadd.f32 %v129, %v130
    %132 = vadd.xlane.f32.xlu0 %v131
    %v133 = vpop.xlane.xlu0 %132
    %v142 = vlaneseq
    %v143 = vand.u32 %v142, 127
    %v144 = vlaneseq
    %v145 = vshrl.u32 %v144, 7
    %v146 = vsub.s32 %v143, %v145
    %v147 = vrot.slane %v98, %v146
    %v148 = vlaneseq
    %v149 = vshrl.u32 %v148, 7
    %v150 = vsub.s32 %v143, %v149
    %v151 = vrot.slane %v103, %v150
    %v152 = vlaneseq
    %v153 = vshrl.u32 %v152, 7
    %v154 = vsub.s32 %v143, %v153
    %v155 = vrot.slane %v108, %v154
    %v156 = vlaneseq
    %v157 = vshrl.u32 %v156, 7
    %v158 = vsub.s32 %v143, %v157
    %v159 = vrot.slane %v113, %v158
    %v160 = vlaneseq
    %v161 = vshrl.u32 %v160, 7
    %v162 = vsub.s32 %v143, %v161
    %v163 = vrot.slane %v118, %v162
    %v164 = vlaneseq
    %v165 = vshrl.u32 %v164, 7
    %v166 = vsub.s32 %v143, %v165
    %v167 = vrot.slane %v123, %v166
    %v168 = vlaneseq
    %v169 = vshrl.u32 %v168, 7
    %v170 = vsub.s32 %v143, %v169
    %v171 = vrot.slane %v128, %v170
    %v172 = vlaneseq
    %v173 = vshrl.u32 %v172, 7
    %v174 = vsub.s32 %v143, %v173
    %v175 = vrot.slane %v133, %v174
    %vm176 = vcmask 1041409
    %v177 = vsel %vm176, %v151, %v147
    %vm178 = vcmask 1042434
    %v179 = vsel %vm178, %v155, %v177
    %vm180 = vcmask 1043459
    %v181 = vsel %vm180, %v159, %v179
    %vm182 = vcmask 1044484
    %v183 = vsel %vm182, %v163, %v181
    %vm184 = vcmask 1045509
    %v185 = vsel %vm184, %v167, %v183
    %vm186 = vcmask 1046534
    %v187 = vsel %vm186, %v171, %v185
    %vm188 = vcmask 1047559
    %v189 = vsel %vm188, %v175, %v187
    %v191 = vadd.f32 %v60, %v189
    %vm192 = vcmask 31744
    %193 = vst.msk [vmem:[#allocation2] sm:$0xff] %vm192, %v191
    // Predicated region
    $region30: #{tpu_custom_call.1} parent=1 // pred_check
      %p194 = pneg %p54
    $region31: #{tpu_custom_call.1} parent=1 // pred_check_branch
      %196 = sbr.rel (%p194) target = $region33
    $region32: #{tpu_custom_call.1} parent=1 // pred_region
      %v197 = vld [vmem:[#allocation2] sm:$0xff]
      %v198 = vld [vmem:[#allocation6] sm:$0xf]
      %v200 = vsel %vm192, %v197, 0
      %v203 = vsel %vm93, %v198, 0
      %205 = vmatprep.subr.mxu0 0.0
      %206 = vmatpush1.msra.mxu0 %v203
      %207 = vmatprep.subr.mxu0 0.0
      %208 = vmatpush1.msra.mxu0 0.0
      %209 = vmatprep.subr.mxu0 0.0
      %210 = vmatpush1.msra.mxu0 0.0
      %211 = vmatprep.subr.mxu0 0.0
      %212 = vmatpush1.msra.mxu0 0.0
      %213 = vmatprep.subr.mxu0 0.0
      %214 = vmatpush1.msra.mxu0 0.0
      %215 = vmatprep.subr.mxu0 0.0
      %216 = vmatpush1.msra.mxu0 0.0
      %217 = vmatprep.subr.mxu0 0.0
      %218 = vmatpush1.msra.mxu0 0.0
      %219 = vmatprep.subr.mxu0 0.0
      %220 = vmatpush1.msra.mxu0 0.0
      %221 = vmatprep.subr.mxu0 0.0
      %222 = vmatpush1.msra.mxu0 0.0
      %223 = vmatprep.subr.mxu0 0.0
      %224 = vmatpush1.msra.mxu0 0.0
      %225 = vmatprep.subr.mxu0 0.0
      %226 = vmatpush1.msra.mxu0 0.0
      %227 = vmatprep.subr.mxu0 0.0
      %228 = vmatpush1.msra.mxu0 0.0
      %229 = vmatprep.subr.mxu0 0.0
      %230 = vmatpush1.msra.mxu0 0.0
      %231 = vmatprep.subr.mxu0 0.0
      %232 = vmatpush1.msra.mxu0 0.0
      %233 = vmatprep.subr.mxu0 0.0
      %234 = vmatpush1.msra.mxu0 0.0
      %235 = vmatprep.subr.mxu0 0.0
      %236 = vmatpush1.msra.mxu0 0.0
      %237 = vmatprep.subr.mxu0 0.0
      %238 = vmatpush1.msra.mxu0 0.0
      %239 = vmatprep.subr.mxu0 0.0
      %240 = vmatpush1.msra.mxu0 0.0
      %241 = vmatprep.subr.mxu0 0.0
      %242 = vmatpush1.msra.mxu0 0.0
      %243 = vmatprep.subr.mxu0 0.0
      %244 = vmatpush1.msra.mxu0 0.0
      %245 = vmatprep.subr.mxu0 0.0
      %246 = vmatpush1.msra.mxu0 0.0
      %247 = vmatprep.subr.mxu0 0.0
      %248 = vmatpush1.msra.mxu0 0.0
      %249 = vmatprep.subr.mxu0 0.0
      %250 = vmatpush1.msra.mxu0 0.0
      %251 = vmatprep.subr.mxu0 0.0
      %252 = vmatpush1.msra.mxu0 0.0
      %253 = vmatprep.subr.mxu0 0.0
      %254 = vmatpush1.msra.mxu0 0.0
      %255 = vmatprep.subr.mxu0 0.0
      %256 = vmatpush1.msra.mxu0 0.0
      %257 = vmatprep.subr.mxu0 0.0
      %258 = vmatpush1.msra.mxu0 0.0
      %259 = vmatprep.subr.mxu0 0.0
      %260 = vmatpush1.msra.mxu0 0.0
      %261 = vmatprep.subr.mxu0 0.0
      %262 = vmatpush1.msra.mxu0 0.0
      %263 = vmatprep.subr.mxu0 0.0
      %264 = vmatpush1.msra.mxu0 0.0
      %265 = vmatprep.subr.mxu0 0.0
      %266 = vmatpush1.msra.mxu0 0.0
      %267 = vmatprep.subr.mxu0 0.0
      %268 = vmatpush1.msra.mxu0 0.0
      %269 = vmatprep.mubr.f32.mxu0 0.0
      %270 = vmatmul.mubr.f32.gmra.mrb[0].mxu0 %v200
      %v271 = vpop.f32.mrb[0].mxu0
      %v272 = vadd.f32 0.0, %v271
      %v273 = vpop.f32.mrb[0].mxu0
      %274 = vdwg.mxu0
      %v275 = vmax.f32 %v272, 0.0
      %v276 = vld [vmem:[#allocation8] sm:$0xff]
      %v277 = vld [vmem:[#allocation8 + $0x8] sm:$0xff]
      %v278 = vld [vmem:[#allocation8 + $0x10] sm:$0xff]
      %v279 = vld [vmem:[#allocation8 + $0x18] sm:$0xff]
      %v280 = vld [vmem:[#allocation8 + $0x20] sm:$0xff]
      %v281 = vld [vmem:[#allocation8 + $0x28] sm:$0xff]
      %v282 = vld [vmem:[#allocation8 + $0x30] sm:$0xff]
      %v283 = vld [vmem:[#allocation8 + $0x38] sm:$0xff]
      %v284 = vld [vmem:[#allocation8 + $0x40] sm:$0xff]
      %v285 = vld [vmem:[#allocation8 + $0x48] sm:$0xff]
      %v286 = vld [vmem:[#allocation8 + $0x50] sm:$0xff]
      %v287 = vld [vmem:[#allocation8 + $0x58] sm:$0xff]
      %v288 = vld [vmem:[#allocation8 + $0x60] sm:$0xff]
      %v289 = vld [vmem:[#allocation8 + $0x68] sm:$0xff]
      %v290 = vld [vmem:[#allocation8 + $0x70] sm:$0xff]
      %v291 = vld [vmem:[#allocation8 + $0x78] sm:$0xff]
      %292 = vmatprep.subr.mxu0 0.0
      %293 = vmatpush1.msra.mxu0 %v276
      %294 = vmatprep.subr.mxu0 0.0
      %295 = vmatpush1.msra.mxu0 %v277
      %296 = vmatprep.subr.mxu0 0.0
      %297 = vmatpush1.msra.mxu0 %v278
      %298 = vmatprep.subr.mxu0 0.0
      %299 = vmatpush1.msra.mxu0 %v279
      %300 = vmatprep.subr.mxu0 0.0
      %301 = vmatpush1.msra.mxu0 %v280
      %302 = vmatprep.subr.mxu0 0.0
      %303 = vmatpush1.msra.mxu0 %v281
      %304 = vmatprep.subr.mxu0 0.0
      %305 = vmatpush1.msra.mxu0 %v282
      %306 = vmatprep.subr.mxu0 0.0
      %307 = vmatpush1.msra.mxu0 %v283
      %308 = vmatprep.subr.mxu0 0.0
      %309 = vmatpush1.msra.mxu0 %v284
      %310 = vmatprep.subr.mxu0 0.0
      %311 = vmatpush1.msra.mxu0 %v285
      %312 = vmatprep.subr.mxu0 0.0
      %313 = vmatpush1.msra.mxu0 %v286
      %314 = vmatprep.subr.mxu0 0.0
      %315 = vmatpush1.msra.mxu0 %v287
      %316 = vmatprep.subr.mxu0 0.0
      %317 = vmatpush1.msra.mxu0 %v288
      %318 = vmatprep.subr.mxu0 0.0
      %319 = vmatpush1.msra.mxu0 %v289
      %320 = vmatprep.subr.mxu0 0.0
      %321 = vmatpush1.msra.mxu0 %v290
      %322 = vmatprep.subr.mxu0 0.0
      %323 = vmatpush1.msra.mxu0 %v291
      %324 = vmatprep.subr.mxu0 0.0
      %325 = vmatpush1.msra.mxu0 0.0
      %326 = vmatprep.subr.mxu0 0.0
      %327 = vmatpush1.msra.mxu0 0.0
      %328 = vmatprep.subr.mxu0 0.0
      %329 = vmatpush1.msra.mxu0 0.0
      %330 = vmatprep.subr.mxu0 0.0
      %331 = vmatpush1.msra.mxu0 0.0
      %332 = vmatprep.subr.mxu0 0.0
      %333 = vmatpush1.msra.mxu0 0.0
      %334 = vmatprep.subr.mxu0 0.0
      %335 = vmatpush1.msra.mxu0 0.0
      %336 = vmatprep.subr.mxu0 0.0
      %337 = vmatpush1.msra.mxu0 0.0
      %338 = vmatprep.subr.mxu0 0.0
      %339 = vmatpush1.msra.mxu0 0.0
      %340 = vmatprep.subr.mxu0 0.0
      %341 = vmatpush1.msra.mxu0 0.0
      %342 = vmatprep.subr.mxu0 0.0
      %343 = vmatpush1.msra.mxu0 0.0
      %344 = vmatprep.subr.mxu0 0.0
      %345 = vmatpush1.msra.mxu0 0.0
      %346 = vmatprep.subr.mxu0 0.0
      %347 = vmatpush1.msra.mxu0 0.0
      %348 = vmatprep.subr.mxu0 0.0
      %349 = vmatpush1.msra.mxu0 0.0
      %350 = vmatprep.subr.mxu0 0.0
      %351 = vmatpush1.msra.mxu0 0.0
      %352 = vmatprep.subr.mxu0 0.0
      %353 = vmatpush1.msra.mxu0 0.0
      %354 = vmatprep.subr.mxu0 0.0
      %355 = vmatpush1.msra.mxu0 0.0
      %356 = vmatprep.mubr.f32.mxu0 0.0
      %357 = vmatmul.mubr.f32.gmra.mrb[0].mxu0 %v275
      %v358 = vpop.f32.mrb[0].mxu0
      %v359 = vadd.f32 0.0, %v358
      %v360 = vpop.f32.mrb[0].mxu0
      %361 = vdwg.mxu0
      %362 = vst [vmem:[#allocation9] sm:$0xff] %v359
    $region33: #{tpu_custom_call.1} parent=1 // pred_fallthru
      _
    // Predicated region
    $region34: #{tpu_custom_call.1} parent=1 // pred_check
      _
    $region35: #{tpu_custom_call.1} parent=1 // pred_check_branch
      %364 = sbr.rel (0) target = $region37
    $region36: #{tpu_custom_call.1} parent=1 // pred_region
      %s366 = ssub.s32 128, 128
      %367 = vsyncadd [#allocation5], %s366
      %s369 = sshll.u32 [#allocation9], 4
      %s370 = int_to_ptr.vmem [resolvable:$true] %s369
      %372 = dma.vmem_to_hbm [thread:$0]  %s370, 128, %s3, [#allocation5]
    $region37: #{tpu_custom_call.1} parent=1 // pred_fallthru
      _
    // Predicated region
    $region38: #{tpu_custom_call.1} parent=1 // pred_check
      _
    $region39: #{tpu_custom_call.1} parent=1 // pred_check_branch
      %374 = sbr.rel (0) target = $region41
    $region40: #{tpu_custom_call.1} parent=1 // pred_region
      %375 = dma.done [#allocation5], 128
    $region41: #{tpu_custom_call.1} parent=1 // pred_fallthru
      _
    %376 = vsyncpa [#allocation4], 1
    %377 = vsyncpa [#allocation7], 1
    %378 = vsyncpa [#allocation5], 1

</llo_original>
